<compile_context>
chip_gen: v7x
topology: tpu7x:2x2x1
jax: 0.10.0
libtpu: 0.0.40
codegen_flags: <defaults>
</compile_context>

<pallas_src>
import jax
import jax.numpy as jnp
import numpy as np
from jax import lax
from jax.experimental import pallas as pl
from jax.experimental.pallas import tpu as pltpu

# pcf-style constants (feature column indices)
DEPOT_IDX = 0
OPENING_TIME_WINDOW_IDX = 1
CLOSING_TIME_WINDOW_IDX = 2
ARRIVAL_TIME_IDX = 3
REWARD_IDX = 4


def _full_spec(shape):
    nd = len(shape)
    return pl.BlockSpec(shape, lambda i, _nd=nd: (0,) * _nd)


# ----------------------------------------------------------------------------
# Shared in-kernel math (plain jnp/lax; traced inside the Pallas kernels)
# ----------------------------------------------------------------------------
def _lookahead_adj(dist, d_act, ptime, mask, tw_open, tw_close, dlast, ttime):
    """Lookahead.get_adjacency_mask, batched, boolean combine, diagonal folded in.

    dist (B,N,N), d_act (B,N)=dist[b,act,:], ptime (B,1), mask (B,N),
    tw_open/tw_close/dlast (B,N), ttime (B,1)  ->  adj (B,N,N) float32
    """
    B, N, _ = dist.shape
    arrive1 = d_act + ptime                                       # (B, N)
    fpresent = arrive1 + jnp.maximum(0.0, tw_open - arrive1)      # (B, N)
    arrive2 = dist + fpresent[:, :, None]                         # (B, N, N)
    t_arr = arrive2 + jnp.maximum(0.0, tw_open[:, :, None] - arrive2)
    feasible = jnp.logical_and(t_arr <= tw_close[:, None, :],
                               t_arr + dlast[:, None, :] <= ttime[:, :, None])
    row_ids = lax.broadcasted_iota(jnp.int32, (B, N, N), 1)
    col_ids = lax.broadcasted_iota(jnp.int32, (B, N, N), 2)
    return jnp.where(row_ids == col_ids, jnp.float32(1.0),
                     jnp.where(feasible, mask[:, None, :], jnp.float32(0.0)))


def _linear(x3d, w, b):
    """Batch-collapsed Linear: ONE MXU matmul over (B*N, F) rows."""
    B, N, F = x3d.shape
    y = jnp.dot(x3d.reshape(B * N, F), w, preferred_element_type=jnp.float32) + b
    return y.reshape(B, N, w.shape[-1])


# ----------------------------------------------------------------------------
# Kernel 1: episode init (initial adjacency mask + hoisted static embedding)
# ----------------------------------------------------------------------------
def _episode_init_kernel(dist_ref, d_dep_ref, two_ref, twc_ref, dlast_ref, ttime_ref,
                         sta_ref, dyn_ref, wsta_ref, bsta_ref, wdyn_ref, bdyn_ref,
                         adj_ref, emb1_ref, enc_ref):
    B, N, _ = dist_ref.shape
    ones_mask = jnp.ones((B, N), jnp.float32)         # initial mask
    zero_time = jnp.zeros((B, 1), jnp.float32)        # initial present_time
    adj_ref[...] = _lookahead_adj(dist_ref[...], d_dep_ref[...], zero_time, ones_mask,
                                  two_ref[...], twc_ref[...], dlast_ref[...],
                                  ttime_ref[...])
    emb1 = _linear(sta_ref[...], wsta_ref[...], bsta_ref[...])   # sta_emb (hoisted)
    emb2 = _linear(dyn_ref[...], wdyn_ref[...], bdyn_ref[...])   # dyn_emb
    emb1_ref[...] = emb1
    enc_ref[...] = jnp.concatenate([emb1, emb2], axis=-1)        # single lane-dense store


# ----------------------------------------------------------------------------
# Kernel 2: one fused decoding step
#   policy surrogate -> greedy select -> update_mask -> env time stand-in
#   -> lookahead adjacency -> dyn_emb + concat with hoisted static embedding
# ----------------------------------------------------------------------------
def _episode_step_kernel(enc_ref, mask_ref, ptime_ref, prev_ref,
                         dist_ref, two_ref, twc_ref, dlast_ref, ttime_ref,
                         emb1_ref, dyn_ref, wdyn_ref, bdyn_ref, head_ref,
                         act_ref, logp_ref, ent_ref, nmask_ref, nptime_ref,
                         adj_ref, enc_out_ref):
    B, N, _ = dist_ref.shape
    mask = mask_ref[...]                                          # (B, N)
    col = lax.broadcasted_iota(jnp.int32, (B, N), 1)

    # TODO(synk): real policy comes from self.neuralnet (attention encoder + LSTM
    # pointer decoder, external module); deterministic masked-softmax surrogate here.
    scores = jnp.sum(enc_ref[...] * head_ref[...][None, :, :], axis=-1)   # (B, N)
    scores = jnp.where(mask > 0, scores, -1e9)
    m = jnp.max(scores, axis=1, keepdims=True)
    e = jnp.exp(scores - m)
    policy = e / jnp.sum(e, axis=1, keepdims=True)

    # select_actions('greedy'): first argmax (matches torch.max tie behaviour),
    # log of selected prob, zero entropy.
    prob = jnp.max(policy, axis=1, keepdims=True)                          # (B, 1)
    idx = jnp.min(jnp.where(policy == prob, col, N), axis=1, keepdims=True)
    onehot = col == idx                                                    # (B, N) bool
    act_ref[...] = idx.astype(jnp.int32)
    logp_ref[...] = jnp.log(prob)      # NOTE: -inf if every node is masked (matches torch)
    ent_ref[...] = jnp.zeros_like(prob)

    # update_mask: nmask[b, action_b] = 0
    nmask = jnp.where(onehot, jnp.float32(0.0), mask)
    nmask_ref[...] = nmask

    dist = dist_ref[...]
    onehot_f = onehot.astype(jnp.float32)

    # TODO(synk): enviroment.step() is external; stand-in advances present_time by
    # the travel time dist[prev_action, action] (one-hot reduce, no dynamic gather).
    prev_oh = (col == prev_ref[...]).astype(jnp.float32)                   # (B, N)
    row_prev = jnp.sum(dist * prev_oh[:, :, None], axis=1)                 # dist[b,prev,:]
    nptime = ptime_ref[...] + jnp.sum(row_prev * onehot_f, axis=1, keepdims=True)
    nptime_ref[...] = nptime

    # Lookahead.get_adjacency_mask with the updated mask / time / action.
    d_act = jnp.sum(dist * onehot_f[:, :, None], axis=1)                   # dist[b,act,:]
    adj_ref[...] = _lookahead_adj(dist, d_act, nptime, nmask,
                                  two_ref[...], twc_ref[...],
                                  dlast_ref[...], ttime_ref[...])

    # dyn_emb Linear + concat with hoisted static embedding (single (B,N,2E) store).
    # TODO(synk): dyn_feat.make_dynamic_feat is external; dyn_ref is a fixed stand-in.
    emb2 = _linear(dyn_ref[...], wdyn_ref[...], bdyn_ref[...])
    enc_out_ref[...] = jnp.concatenate([emb1_ref[...], emb2], axis=-1)


# ----------------------------------------------------------------------------
# Wrappers
# ----------------------------------------------------------------------------
@jax.jit
def episode_init(dist, d_depot, tw_open, tw_close, dlast, ttime,
                 sta_scaled, dyn, wsta, bsta, wdyn, bdyn):
    B, N, _ = dist.shape
    E = wsta.shape[-1]
    args = (dist, d_depot, tw_open, tw_close, dlast, ttime,
            sta_scaled, dyn, wsta, bsta, wdyn, bdyn)
    out_shapes = (jax.ShapeDtypeStruct((B, N, N), jnp.float32),
                  jax.ShapeDtypeStruct((B, N, E), jnp.float32),
                  jax.ShapeDtypeStruct((B, N, 2 * E), jnp.float32))
    return pl.pallas_call(
        _episode_init_kernel,
        out_shape=out_shapes,
        grid=(1,),
        in_specs=[_full_spec(a.shape) for a in args],
        out_specs=tuple(_full_spec(s.shape) for s in out_shapes),
        compiler_params=pltpu.CompilerParams(dimension_semantics=("arbitrary",)),
    )(*args)


@jax.jit
def episode_step(enc, mask, ptime, prev_actions, dist, tw_open, tw_close, dlast,
                 ttime, emb1, dyn, wdyn, bdyn, head):
    B, N, _ = dist.shape
    E = emb1.shape[-1]
    args = (enc, mask, ptime, prev_actions, dist, tw_open, tw_close, dlast,
            ttime, emb1, dyn, wdyn, bdyn, head)
    out_shapes = (jax.ShapeDtypeStruct((B, 1), jnp.int32),      # actions
                  jax.ShapeDtypeStruct((B, 1), jnp.float32),    # log_prob
                  jax.ShapeDtypeStruct((B, 1), jnp.float32),    # entropy
                  jax.ShapeDtypeStruct((B, N), jnp.float32),    # updated mask
                  jax.ShapeDtypeStruct((B, 1), jnp.float32),    # updated present_time
                  jax.ShapeDtypeStruct((B, N, N), jnp.float32), # adjacency mask
                  jax.ShapeDtypeStruct((B, N, 2 * E), jnp.float32))  # enc_inputs
    return pl.pallas_call(
        _episode_step_kernel,
        out_shape=out_shapes,
        grid=(1,),
        in_specs=[_full_spec(a.shape) for a in args],
        out_specs=tuple(_full_spec(s.shape) for s in out_shapes),
        compiler_params=pltpu.CompilerParams(dimension_semantics=("arbitrary",)),
    )(*args)


# ----------------------------------------------------------------------------
# Independent pure-JAX reference for Lookahead.get_adjacency_mask (gather-based)
# ----------------------------------------------------------------------------
def adj_mask_ref(raw, mask, dist, act, ptime):
    B, N, _ = raw.shape
    d_act = dist[jnp.arange(B), act]                             # (B, N)
    arrive = d_act + ptime                                       # ptime (B, 1)
    tw_start = raw[:, :, OPENING_TIME_WINDOW_IDX]
    fpresent = arrive + jnp.maximum(0.0, tw_start - arrive)
    arrive2 = dist + fpresent[:, :, None]
    t = arrive2 + jnp.maximum(0.0, tw_start[:, :, None] - arrive2)
    tw_end = raw[:, :, CLOSING_TIME_WINDOW_IDX]
    ttime = raw[:, 0, ARRIVAL_TIME_IDX]
    dl = dist[:, :, DEPOT_IDX]
    c1 = t <= tw_end[:, None, :]
    c2 = t + dl[:, None, :] <= ttime[:, None, None]
    adj = jnp.broadcast_to(mask[:, None, :], (B, N, N)) * c1 * c2
    return jnp.where(jnp.eye(N, dtype=bool)[None], 1.0, adj)


# ----------------------------------------------------------------------------
# Driver: one RunEpisode-style rollout (external pieces are TODO-stubbed)
# ----------------------------------------------------------------------------
if __name__ == "__main__":
    B, N, F = 4, 16, 8          # batch, sequence (nodes), raw feature dim
    FD, E = 8, 32               # dynamic feature dim, embedding dim
    NUM_STEPS = 3               # TODO(synk): real loop runs until enviroment signals done
    key = jax.random.PRNGKey(0)
    ks = jax.random.split(key, 12)

    # instance features
    coord1 = jax.random.uniform(ks[0], (B, N))
    coord2 = jax.random.uniform(ks[1], (B, N))
    tw_open_f = jax.random.uniform(ks[2], (B, N), minval=0.0, maxval=2.0)
    tw_close_f = tw_open_f + jax.random.uniform(ks[3], (B, N), minval=1.0, maxval=3.0)
    tmax = jnp.full((B, N), 10.0)
    reward = jax.random.uniform(ks[4], (B, N))
    filler = jax.random.uniform(ks[5], (B, N, F - 6))
    inst_features = jnp.concatenate(
        [jnp.stack([coord1, tw_open_f, tw_close_f, tmax, reward, coord2], axis=-1), filler],
        axis=-1).astype(jnp.float32)
    inst_features_scaled = (inst_features / 10.0).astype(jnp.float32)

    d = jax.random.uniform(ks[6], (B, N, N), minval=0.1, maxval=1.0)
    dist_mat = ((d + jnp.transpose(d, (0, 2, 1))) * 0.5 * (1.0 - jnp.eye(N))).astype(jnp.float32)

    # deterministic "neuralnet" parameters (sta_emb / dyn_emb Linear + score head)
    wsta = (jax.random.normal(ks[7], (F, E)) * 0.1).astype(jnp.float32)
    bsta = (jax.random.normal(ks[8], (1, E)) * 0.1).astype(jnp.float32)
    wdyn = (jax.random.normal(ks[9], (FD, E)) * 0.1).astype(jnp.float32)
    bdyn = (jax.random.normal(ks[10], (1, E)) * 0.1).astype(jnp.float32)
    head_w = (jax.random.normal(ks[11], (1, 2 * E)) * 0.1).astype(jnp.float32)

    # TODO(synk): dyn_feat.make_dynamic_feat is external; fixed stand-in features.
    dyn_feats = jax.random.uniform(jax.random.PRNGKey(1), (B, N, FD)).astype(jnp.float32)

    # Small per-episode constants precomputed ONCE in the wrapper (no in-kernel
    # transposes / no second full read of dist_mat inside the kernels).
    tw_open = inst_features[:, :, OPENING_TIME_WINDOW_IDX]       # (B, N)
    tw_close = inst_features[:, :, CLOSING_TIME_WINDOW_IDX]      # (B, N)
    dlast = dist_mat[:, :, DEPOT_IDX]                            # (B, N)  dist[b, j, depot]
    ttime = inst_features[:, 0:1, ARRIVAL_TIME_IDX]              # (B, 1)
    d_depot = dist_mat[:, DEPOT_IDX, :]                          # (B, N)  dist[b, depot, :]

    # ---- episode init (mirrors RunEpisode.forward before the while-loop) ----
    adj_mask, emb1, enc_inputs = episode_init(
        dist_mat, d_depot, tw_open, tw_close, dlast, ttime,
        inst_features_scaled, dyn_feats, wsta, bsta, wdyn, bdyn)

    np.testing.assert_allclose(
        np.asarray(adj_mask),
        np.asarray(adj_mask_ref(inst_features, jnp.ones((B, N), jnp.float32), dist_mat,
                                jnp.zeros((B,), jnp.int32), jnp.zeros((B, 1), jnp.float32))),
        rtol=1e-5, atol=1e-5)
    ref_emb1 = inst_features_scaled @ wsta + bsta
    ref_enc = jnp.concatenate([ref_emb1, dyn_feats @ wdyn + bdyn], axis=-1)
    np.testing.assert_allclose(np.asarray(enc_inputs), np.asarray(ref_enc),
                               rtol=5e-2, atol=2e-2)   # MXU vs XLA matmul precision

    # ---- rollout state (mirrors RunEpisode.forward initialisation) ----
    mask = jnp.ones((B, N), jnp.float32)
    present_time = jnp.zeros((B, 1), jnp.float32)
    actions = jnp.zeros((B, 1), jnp.int32)

    lactions = [actions + 1]
    llog_probs, lentropy, lseq_mask = [], [], []
    is_end_seq = jnp.zeros((B,), bool)

    for _step in range(NUM_STEPS):
        prev_enc, prev_mask = enc_inputs, mask
        prev_ptime, prev_act = present_time, actions

        (actions, log_prob, entropy, mask, present_time, adj_mask,
         enc_inputs) = episode_step(enc_inputs, mask, present_time, actions,
                                    dist_mat, tw_open, tw_close, dlast, ttime,
                                    emb1, dyn_feats, wdyn, bdyn, head_w)

        if _step == 0:
            # pure-JAX cross-check of the fused step (same inputs as the kernel)
            bidx = jnp.arange(B)
            ref_scores = jnp.where(prev_mask > 0,
                                   jnp.einsum("bne,e->bn", prev_enc, head_w[0]), -1e9)
            ref_policy = jax.nn.softmax(ref_scores, axis=-1)
            ref_act = jnp.argmax(ref_policy, axis=1)
            np.testing.assert_array_equal(np.asarray(actions[:, 0]), np.asarray(ref_act))
            np.testing.assert_allclose(
                np.asarray(log_prob[:, 0]),
                np.asarray(jnp.log(jnp.max(ref_policy, axis=1))), rtol=1e-3, atol=1e-5)
            ref_mask = prev_mask.at[bidx, ref_act].set(0.0)
            np.testing.assert_array_equal(np.asarray(mask), np.asarray(ref_mask))
            ref_ptime = prev_ptime + dist_mat[bidx, prev_act[:, 0], ref_act][:, None]
            np.testing.assert_allclose(np.asarray(present_time), np.asarray(ref_ptime),
                                       rtol=1e-6, atol=1e-6)
            np.testing.assert_allclose(
                np.asarray(adj_mask),
                np.asarray(adj_mask_ref(inst_features, ref_mask, dist_mat, ref_act, ref_ptime)),
                rtol=1e-5, atol=1e-5)

        lactions.append(actions + 1)
        llog_probs.append(log_prob)
        lentropy.append(entropy)
        lseq_mask.append(~is_end_seq[:, None])
        # TODO(synk): is_end_seq / rewards come from the external enviroment.step().

    out_actions = jnp.concatenate(lactions, axis=1)
    out_logp = jnp.concatenate(llog_probs, axis=1)
    out_entropy = jnp.concatenate(lentropy, axis=1)
    out_seqmask = jnp.concatenate(lseq_mask, axis=1)

    jax.block_until_ready((out_actions, out_logp, out_entropy, out_seqmask, adj_mask))
    print("KERNEL_OK")
</pallas_src>

<mosaic_0001>
module attributes {stable_mosaic.version = 11 : i64} {
  func.func @_episode_init_kernel(%arg0: i32, %arg1: memref<4x16x16xf32, #tpu.memory_space<vmem>>, %arg2: memref<4x16xf32, #tpu.memory_space<vmem>>, %arg3: memref<4x16xf32, #tpu.memory_space<vmem>>, %arg4: memref<4x16xf32, #tpu.memory_space<vmem>>, %arg5: memref<4x16xf32, #tpu.memory_space<vmem>>, %arg6: memref<4x1xf32, #tpu.memory_space<vmem>>, %arg7: memref<4x16x8xf32, #tpu.memory_space<vmem>>, %arg8: memref<4x16x8xf32, #tpu.memory_space<vmem>>, %arg9: memref<8x32xf32, #tpu.memory_space<vmem>>, %arg10: memref<1x32xf32, #tpu.memory_space<vmem>>, %arg11: memref<8x32xf32, #tpu.memory_space<vmem>>, %arg12: memref<1x32xf32, #tpu.memory_space<vmem>>, %arg13: memref<4x16x16xf32, #tpu.memory_space<vmem>>, %arg14: memref<4x16x32xf32, #tpu.memory_space<vmem>>, %arg15: memref<4x16x64xf32, #tpu.memory_space<vmem>>) attributes {dimension_semantics = [#tpu.dimension_semantics<arbitrary>], iteration_bounds = array<i64: 1>, scalar_prefetch = 0 : i64, scratch_operands = 0 : i64, tpu.core_type = #tpu.core_type<tc>, window_params = [{pipeline_mode = #tpu.pipeline_mode<synchronous>, transform_indices = @transform_0, window_bounds = array<i64: 4, 16, 16>}, {pipeline_mode = #tpu.pipeline_mode<synchronous>, transform_indices = @transform_1, window_bounds = array<i64: 4, 16>}, {pipeline_mode = #tpu.pipeline_mode<synchronous>, transform_indices = @transform_2, window_bounds = array<i64: 4, 16>}, {pipeline_mode = #tpu.pipeline_mode<synchronous>, transform_indices = @transform_3, window_bounds = array<i64: 4, 16>}, {pipeline_mode = #tpu.pipeline_mode<synchronous>, transform_indices = @transform_4, window_bounds = array<i64: 4, 16>}, {pipeline_mode = #tpu.pipeline_mode<synchronous>, transform_indices = @transform_5, window_bounds = array<i64: 4, 1>}, {pipeline_mode = #tpu.pipeline_mode<synchronous>, transform_indices = @transform_6, window_bounds = array<i64: 4, 16, 8>}, {pipeline_mode = #tpu.pipeline_mode<synchronous>, transform_indices = @transform_7, window_bounds = array<i64: 4, 16, 8>}, {pipeline_mode = #tpu.pipeline_mode<synchronous>, transform_indices = @transform_8, window_bounds = array<i64: 8, 32>}, {pipeline_mode = #tpu.pipeline_mode<synchronous>, transform_indices = @transform_9, window_bounds = array<i64: 1, 32>}, {pipeline_mode = #tpu.pipeline_mode<synchronous>, transform_indices = @transform_10, window_bounds = array<i64: 8, 32>}, {pipeline_mode = #tpu.pipeline_mode<synchronous>, transform_indices = @transform_11, window_bounds = array<i64: 1, 32>}, {pipeline_mode = #tpu.pipeline_mode<synchronous>, transform_indices = @transform_12, window_bounds = array<i64: 4, 16, 16>}, {pipeline_mode = #tpu.pipeline_mode<synchronous>, transform_indices = @transform_13, window_bounds = array<i64: 4, 16, 32>}, {pipeline_mode = #tpu.pipeline_mode<synchronous>, transform_indices = @transform_14, window_bounds = array<i64: 4, 16, 64>}]} {
    %cst = arith.constant 1.000000e+00 : f32
    %0 = vector.broadcast %cst : f32 to vector<4x16xf32>
    %cst_0 = arith.constant 0.000000e+00 : f32
    %1 = vector.broadcast %cst_0 : f32 to vector<4x1xf32>
    %c0 = arith.constant 0 : index
    %c0_1 = arith.constant 0 : index
    %c0_2 = arith.constant 0 : index
    %2 = vector.load %arg1[%c0, %c0_1, %c0_2] : memref<4x16x16xf32, #tpu.memory_space<vmem>>, vector<4x16x16xf32>
    %c0_3 = arith.constant 0 : index
    %c0_4 = arith.constant 0 : index
    %3 = vector.load %arg2[%c0_3, %c0_4] : memref<4x16xf32, #tpu.memory_space<vmem>>, vector<4x16xf32>
    %c0_5 = arith.constant 0 : index
    %c0_6 = arith.constant 0 : index
    %4 = vector.load %arg3[%c0_5, %c0_6] : memref<4x16xf32, #tpu.memory_space<vmem>>, vector<4x16xf32>
    %c0_7 = arith.constant 0 : index
    %c0_8 = arith.constant 0 : index
    %5 = vector.load %arg4[%c0_7, %c0_8] : memref<4x16xf32, #tpu.memory_space<vmem>>, vector<4x16xf32>
    %c0_9 = arith.constant 0 : index
    %c0_10 = arith.constant 0 : index
    %6 = vector.load %arg5[%c0_9, %c0_10] : memref<4x16xf32, #tpu.memory_space<vmem>>, vector<4x16xf32>
    %c0_11 = arith.constant 0 : index
    %c0_12 = arith.constant 0 : index
    %7 = vector.load %arg6[%c0_11, %c0_12] : memref<4x1xf32, #tpu.memory_space<vmem>>, vector<4x1xf32>
    %8 = vector.broadcast %1 : vector<4x1xf32> to vector<4x16xf32>
    %9 = arith.addf %3, %8 : vector<4x16xf32>
    %10 = arith.subf %4, %9 : vector<4x16xf32>
    %cst_13 = arith.constant 0.000000e+00 : f32
    %11 = vector.broadcast %cst_13 : f32 to vector<4x16xf32>
    %12 = arith.maximumf %11, %10 : vector<4x16xf32>
    %13 = arith.addf %9, %12 : vector<4x16xf32>
    %14 = vector.shape_cast %13 : vector<4x16xf32> to vector<4x16x1xf32>
    %15 = vector.broadcast %14 : vector<4x16x1xf32> to vector<4x16x16xf32>
    %16 = arith.addf %2, %15 : vector<4x16x16xf32>
    %17 = vector.shape_cast %4 : vector<4x16xf32> to vector<4x16x1xf32>
    %18 = vector.broadcast %17 : vector<4x16x1xf32> to vector<4x16x16xf32>
    %19 = arith.subf %18, %16 : vector<4x16x16xf32>
    %cst_14 = arith.constant 0.000000e+00 : f32
    %20 = vector.broadcast %cst_14 : f32 to vector<4x16x16xf32>
    %21 = arith.maximumf %20, %19 : vector<4x16x16xf32>
    %22 = arith.addf %16, %21 : vector<4x16x16xf32>
    %23 = vector.shape_cast %5 : vector<4x16xf32> to vector<4x1x16xf32>
    %24 = vector.broadcast %23 : vector<4x1x16xf32> to vector<4x16x16xf32>
    %25 = arith.cmpf ole, %22, %24 : vector<4x16x16xf32>
    %26 = vector.shape_cast %6 : vector<4x16xf32> to vector<4x1x16xf32>
    %27 = vector.broadcast %26 : vector<4x1x16xf32> to vector<4x16x16xf32>
    %28 = arith.addf %22, %27 : vector<4x16x16xf32>
    %29 = vector.shape_cast %7 : vector<4x1xf32> to vector<4x1x1xf32>
    %30 = vector.broadcast %29 : vector<4x1x1xf32> to vector<4x16x16xf32>
    %31 = arith.cmpf ole, %28, %30 : vector<4x16x16xf32>
    %32 = arith.andi %25, %31 : vector<4x16x16xi1>
    %33 = tpu.iota {dimensions = array<i32: 1>} : vector<4x16x16xi32>
    %34 = tpu.iota {dimensions = array<i32: 2>} : vector<4x16x16xi32>
    %35 = arith.cmpi eq, %33, %34 : vector<4x16x16xi32>
    %36 = vector.shape_cast %0 : vector<4x16xf32> to vector<4x1x16xf32>
    %cst_15 = arith.constant 0.000000e+00 : f32
    %37 = vector.shape_cast %36 : vector<4x1x16xf32> to vector<4x1x16xf32>
    %38 = vector.broadcast %37 : vector<4x1x16xf32> to vector<4x16x16xf32>
    %39 = vector.broadcast %cst_15 : f32 to vector<4x16x16xf32>
    %40 = arith.select %32, %38, %39 : vector<4x16x16xi1>, vector<4x16x16xf32>
    %cst_16 = arith.constant 1.000000e+00 : f32
    %41 = vector.broadcast %cst_16 : f32 to vector<4x16x16xf32>
    %42 = arith.select %35, %41, %40 : vector<4x16x16xi1>, vector<4x16x16xf32>
    %c0_17 = arith.constant 0 : index
    %c0_18 = arith.constant 0 : index
    %c0_19 = arith.constant 0 : index
    %43 = vector.load %arg13[%c0_17, %c0_18, %c0_19] : memref<4x16x16xf32, #tpu.memory_space<vmem>>, vector<4x16x16xf32>
    tpu.vector_store %arg13[%c0_17, %c0_18, %c0_19], %42 {strides = array<i32>} : memref<4x16x16xf32, #tpu.memory_space<vmem>>, vector<4x16x16xf32>,
    %c0_20 = arith.constant 0 : index
    %c0_21 = arith.constant 0 : index
    %c0_22 = arith.constant 0 : index
    %44 = vector.load %arg7[%c0_20, %c0_21, %c0_22] : memref<4x16x8xf32, #tpu.memory_space<vmem>>, vector<4x16x8xf32>
    %c0_23 = arith.constant 0 : index
    %c0_24 = arith.constant 0 : index
    %45 = vector.load %arg9[%c0_23, %c0_24] : memref<8x32xf32, #tpu.memory_space<vmem>>, vector<8x32xf32>
    %c0_25 = arith.constant 0 : index
    %c0_26 = arith.constant 0 : index
    %46 = vector.load %arg10[%c0_25, %c0_26] : memref<1x32xf32, #tpu.memory_space<vmem>>, vector<1x32xf32>
    %47 = vector.shape_cast %44 : vector<4x16x8xf32> to vector<64x8xf32>
    %cst_27 = arith.constant dense<0.000000e+00> : vector<64x32xf32>
    %48 = tpu.matmul %47, %45, %cst_27 {dimension_numbers = #tpu.dot_dimension_numbers<[1], [0], [0], [1], [0, 0, 1, 1], [], []>} : vector<64x8xf32>, vector<8x32xf32>, vector<64x32xf32> -> vector<64x32xf32>
    %49 = vector.broadcast %46 : vector<1x32xf32> to vector<64x32xf32>
    %50 = arith.addf %48, %49 : vector<64x32xf32>
    %51 = vector.shape_cast %50 : vector<64x32xf32> to vector<4x16x32xf32>
    %c0_28 = arith.constant 0 : index
    %c0_29 = arith.constant 0 : index
    %c0_30 = arith.constant 0 : index
    %52 = vector.load %arg8[%c0_28, %c0_29, %c0_30] : memref<4x16x8xf32, #tpu.memory_space<vmem>>, vector<4x16x8xf32>
    %c0_31 = arith.constant 0 : index
    %c0_32 = arith.constant 0 : index
    %53 = vector.load %arg11[%c0_31, %c0_32] : memref<8x32xf32, #tpu.memory_space<vmem>>, vector<8x32xf32>
    %c0_33 = arith.constant 0 : index
    %c0_34 = arith.constant 0 : index
    %54 = vector.load %arg12[%c0_33, %c0_34] : memref<1x32xf32, #tpu.memory_space<vmem>>, vector<1x32xf32>
    %55 = vector.shape_cast %52 : vector<4x16x8xf32> to vector<64x8xf32>
    %cst_35 = arith.constant dense<0.000000e+00> : vector<64x32xf32>
    %56 = tpu.matmul %55, %53, %cst_35 {dimension_numbers = #tpu.dot_dimension_numbers<[1], [0], [0], [1], [0, 0, 1, 1], [], []>} : vector<64x8xf32>, vector<8x32xf32>, vector<64x32xf32> -> vector<64x32xf32>
    %57 = vector.broadcast %54 : vector<1x32xf32> to vector<64x32xf32>
    %58 = arith.addf %56, %57 : vector<64x32xf32>
    %59 = vector.shape_cast %58 : vector<64x32xf32> to vector<4x16x32xf32>
    %c0_36 = arith.constant 0 : index
    %c0_37 = arith.constant 0 : index
    %c0_38 = arith.constant 0 : index
    %60 = vector.load %arg14[%c0_36, %c0_37, %c0_38] : memref<4x16x32xf32, #tpu.memory_space<vmem>>, vector<4x16x32xf32>
    tpu.vector_store %arg14[%c0_36, %c0_37, %c0_38], %51 {strides = array<i32>} : memref<4x16x32xf32, #tpu.memory_space<vmem>>, vector<4x16x32xf32>,
    %61 = tpu.concatenate %51, %59 in 2 : vector<4x16x32xf32>, vector<4x16x32xf32> -> vector<4x16x64xf32>
    %c0_39 = arith.constant 0 : index
    %c0_40 = arith.constant 0 : index
    %c0_41 = arith.constant 0 : index
    %62 = vector.load %arg15[%c0_39, %c0_40, %c0_41] : memref<4x16x64xf32, #tpu.memory_space<vmem>>, vector<4x16x64xf32>
    tpu.vector_store %arg15[%c0_39, %c0_40, %c0_41], %61 {strides = array<i32>} : memref<4x16x64xf32, #tpu.memory_space<vmem>>, vector<4x16x64xf32>,
    return
  }
  func.func @transform_0(%arg0: i32) -> (i32, i32, i32) {
    %c0_i32 = arith.constant 0 : i32
    %c0_i32_0 = arith.constant 0 : i32
    %c0_i32_1 = arith.constant 0 : i32
    %c0_i32_2 = arith.constant 0 : i32
    return %c0_i32, %c0_i32_0, %c0_i32_1 : i32, i32, i32
  }
  func.func @transform_1(%arg0: i32) -> (i32, i32) {
    %c0_i32 = arith.constant 0 : i32
    %c0_i32_0 = arith.constant 0 : i32
    %c0_i32_1 = arith.constant 0 : i32
    return %c0_i32, %c0_i32_0 : i32, i32
  }
  func.func @transform_2(%arg0: i32) -> (i32, i32) {
    %c0_i32 = arith.constant 0 : i32
    %c0_i32_0 = arith.constant 0 : i32
    %c0_i32_1 = arith.constant 0 : i32
    return %c0_i32, %c0_i32_0 : i32, i32
  }
  func.func @transform_3(%arg0: i32) -> (i32, i32) {
    %c0_i32 = arith.constant 0 : i32
    %c0_i32_0 = arith.constant 0 : i32
    %c0_i32_1 = arith.constant 0 : i32
    return %c0_i32, %c0_i32_0 : i32, i32
  }
  func.func @transform_4(%arg0: i32) -> (i32, i32) {
    %c0_i32 = arith.constant 0 : i32
    %c0_i32_0 = arith.constant 0 : i32
    %c0_i32_1 = arith.constant 0 : i32
    return %c0_i32, %c0_i32_0 : i32, i32
  }
  func.func @transform_5(%arg0: i32) -> (i32, i32) {
    %c0_i32 = arith.constant 0 : i32
    %c0_i32_0 = arith.constant 0 : i32
    %c0_i32_1 = arith.constant 0 : i32
    return %c0_i32, %c0_i32_0 : i32, i32
  }
  func.func @transform_6(%arg0: i32) -> (i32, i32, i32) {
    %c0_i32 = arith.constant 0 : i32
    %c0_i32_0 = arith.constant 0 : i32
    %c0_i32_1 = arith.constant 0 : i32
    %c0_i32_2 = arith.constant 0 : i32
    return %c0_i32, %c0_i32_0, %c0_i32_1 : i32, i32, i32
  }
  func.func @transform_7(%arg0: i32) -> (i32, i32, i32) {
    %c0_i32 = arith.constant 0 : i32
    %c0_i32_0 = arith.constant 0 : i32
    %c0_i32_1 = arith.constant 0 : i32
    %c0_i32_2 = arith.constant 0 : i32
    return %c0_i32, %c0_i32_0, %c0_i32_1 : i32, i32, i32
  }
  func.func @transform_8(%arg0: i32) -> (i32, i32) {
    %c0_i32 = arith.constant 0 : i32
    %c0_i32_0 = arith.constant 0 : i32
    %c0_i32_1 = arith.constant 0 : i32
    return %c0_i32, %c0_i32_0 : i32, i32
  }
  func.func @transform_9(%arg0: i32) -> (i32, i32) {
    %c0_i32 = arith.constant 0 : i32
    %c0_i32_0 = arith.constant 0 : i32
    %c0_i32_1 = arith.constant 0 : i32
    return %c0_i32, %c0_i32_0 : i32, i32
  }
  func.func @transform_10(%arg0: i32) -> (i32, i32) {
    %c0_i32 = arith.constant 0 : i32
    %c0_i32_0 = arith.constant 0 : i32
    %c0_i32_1 = arith.constant 0 : i32
    return %c0_i32, %c0_i32_0 : i32, i32
  }
  func.func @transform_11(%arg0: i32) -> (i32, i32) {
    %c0_i32 = arith.constant 0 : i32
    %c0_i32_0 = arith.constant 0 : i32
    %c0_i32_1 = arith.constant 0 : i32
    return %c0_i32, %c0_i32_0 : i32, i32
  }
  func.func @transform_12(%arg0: i32) -> (i32, i32, i32) {
    %c0_i32 = arith.constant 0 : i32
    %c0_i32_0 = arith.constant 0 : i32
    %c0_i32_1 = arith.constant 0 : i32
    %c0_i32_2 = arith.constant 0 : i32
    return %c0_i32, %c0_i32_0, %c0_i32_1 : i32, i32, i32
  }
  func.func @transform_13(%arg0: i32) -> (i32, i32, i32) {
    %c0_i32 = arith.constant 0 : i32
    %c0_i32_0 = arith.constant 0 : i32
    %c0_i32_1 = arith.constant 0 : i32
    %c0_i32_2 = arith.constant 0 : i32
    return %c0_i32, %c0_i32_0, %c0_i32_1 : i32, i32, i32
  }
  func.func @transform_14(%arg0: i32) -> (i32, i32, i32) {
    %c0_i32 = arith.constant 0 : i32
    %c0_i32_0 = arith.constant 0 : i32
    %c0_i32_1 = arith.constant 0 : i32
    %c0_i32_2 = arith.constant 0 : i32
    return %c0_i32, %c0_i32_0, %c0_i32_1 : i32, i32, i32
  }
}

</mosaic_0001>

<llo_original>
// kernel: episode_init.1
$region0: #{episode_init.1}
  #allocation0 [shape = 'u32[]', space=smem, size = 0x4, offset = 0x4, fixed_abs, tag = 'smem constant byte address 0x4 - core index']
  #allocation1 [shape = 'u32[144,128]{1,0:T(1,128)}', space=vmem, size = 0x12000, scoped, tag = 'internal scratch']
  %s0 = inlined_call_operand.vmem [shape: f32[4,16,16], index: 0, kind: input, shape index: {}]
  %s1 = inlined_call_operand.vmem [shape: f32[4,16], index: 1, kind: input, shape index: {}]
  %s2 = inlined_call_operand.vmem [shape: f32[4,16], index: 2, kind: input, shape index: {}]
  %s3 = inlined_call_operand.vmem [shape: f32[4,16], index: 3, kind: input, shape index: {}]
  %s4 = inlined_call_operand.vmem [shape: f32[4,16], index: 4, kind: input, shape index: {}]
  %s5 = inlined_call_operand.vmem [shape: f32[4,1], index: 5, kind: input, shape index: {}]
  %s6 = inlined_call_operand.vmem [shape: f32[4,16,8], index: 6, kind: input, shape index: {}]
  %s7 = inlined_call_operand.vmem [shape: f32[4,16,8], index: 7, kind: input, shape index: {}]
  %s8 = inlined_call_operand.vmem [shape: f32[8,32], index: 8, kind: input, shape index: {}]
  %s9 = inlined_call_operand.vmem [shape: f32[1,32], index: 9, kind: input, shape index: {}]
  %s10 = inlined_call_operand.vmem [shape: f32[8,32], index: 10, kind: input, shape index: {}]
  %s11 = inlined_call_operand.vmem [shape: f32[1,32], index: 11, kind: input, shape index: {}]
  %s12 = inlined_call_operand.hbm [shape: f32[4,16,16], index: 12, kind: output, shape index: {0}]
  %s13 = inlined_call_operand.hbm [shape: f32[4,16,32], index: 13, kind: output, shape index: {1}]
  %s14 = inlined_call_operand.hbm [shape: f32[4,16,64], index: 14, kind: output, shape index: {2}]
  %15 = xla_tuple %s12, %s13, %s14
  %s16 = sld [smem:[#allocation0]]
  $region74: #{episode_init.1} parent=0
    _
  %s18 = ssub.s32 1, %s16
  %s19 = scalar_select 0, %s18, %s16
  $region1: #{episode_init.1} parent=0
    #allocation2 [shape = 'u8[32768]{0}', space=vmem, size = 0x8000, scoped, tag = 'output window, operand 0, single buffered']
    #allocation3 [shape = 's32[1]{0}', space=sflag, size = 0x4, scoped, tag = 'scoped memory for episode_init.1']
    #allocation4 [shape = 'u8[32768]{0}', space=vmem, size = 0x8000, scoped, tag = 'output window, operand 1, single buffered']
    #allocation5 [shape = 's32[1]{0}', space=sflag, size = 0x4, scoped, tag = 'scoped memory for episode_init.1']
    #allocation6 [shape = 'u8[32768]{0}', space=vmem, size = 0x8000, scoped, tag = 'output window, operand 2, single buffered']
    %20 = vsyncpa [#allocation3], 0
    %21 = vsyncpa [#allocation5], 0
    // Predicated region
    $region2: #{episode_init.1} parent=1 // pred_check
      _
    $region3: #{episode_init.1} parent=1 // pred_check_branch
      %23 = sbr.rel (0) target = $region5
    $region4: #{episode_init.1} parent=1 // pred_region
      _
    $region5: #{episode_init.1} parent=1 // pred_fallthru
      _
    // Predicated region
    $region6: #{episode_init.1} parent=1 // pred_check
      _
    $region7: #{episode_init.1} parent=1 // pred_check_branch
      %25 = sbr.rel (0) target = $region9
    $region8: #{episode_init.1} parent=1 // pred_region
      _
    $region9: #{episode_init.1} parent=1 // pred_fallthru
      _
    // Predicated region
    $region10: #{episode_init.1} parent=1 // pred_check
      _
    $region11: #{episode_init.1} parent=1 // pred_check_branch
      %27 = sbr.rel (0) target = $region13
    $region12: #{episode_init.1} parent=1 // pred_region
      _
    $region13: #{episode_init.1} parent=1 // pred_fallthru
      _
    // Predicated region
    $region14: #{episode_init.1} parent=1 // pred_check
      _
    $region15: #{episode_init.1} parent=1 // pred_check_branch
      %29 = sbr.rel (0) target = $region17
    $region16: #{episode_init.1} parent=1 // pred_region
      _
    $region17: #{episode_init.1} parent=1 // pred_fallthru
      _
    // Predicated region
    $region18: #{episode_init.1} parent=1 // pred_check
      _
    $region19: #{episode_init.1} parent=1 // pred_check_branch
      %31 = sbr.rel (0) target = $region21
    $region20: #{episode_init.1} parent=1 // pred_region
      _
    $region21: #{episode_init.1} parent=1 // pred_fallthru
      _
    // Predicated region
    $region22: #{episode_init.1} parent=1 // pred_check
      _
    $region23: #{episode_init.1} parent=1 // pred_check_branch
      %33 = sbr.rel (0) target = $region25
    $region24: #{episode_init.1} parent=1 // pred_region
      _
    $region25: #{episode_init.1} parent=1 // pred_fallthru
      _
    // Predicated region
    $region26: #{episode_init.1} parent=1 // pred_check
      _
    $region27: #{episode_init.1} parent=1 // pred_check_branch
      %35 = sbr.rel (0) target = $region29
    $region28: #{episode_init.1} parent=1 // pred_region
      _
    $region29: #{episode_init.1} parent=1 // pred_fallthru
      _
    // Predicated region
    $region30: #{episode_init.1} parent=1 // pred_check
      _
    $region31: #{episode_init.1} parent=1 // pred_check_branch
      %37 = sbr.rel (0) target = $region33
    $region32: #{episode_init.1} parent=1 // pred_region
      _
    $region33: #{episode_init.1} parent=1 // pred_fallthru
      _
    // Predicated region
    $region34: #{episode_init.1} parent=1 // pred_check
      _
    $region35: #{episode_init.1} parent=1 // pred_check_branch
      %39 = sbr.rel (0) target = $region37
    $region36: #{episode_init.1} parent=1 // pred_region
      _
    $region37: #{episode_init.1} parent=1 // pred_fallthru
      _
    // Predicated region
    $region38: #{episode_init.1} parent=1 // pred_check
      _
    $region39: #{episode_init.1} parent=1 // pred_check_branch
      %41 = sbr.rel (0) target = $region41
    $region40: #{episode_init.1} parent=1 // pred_region
      _
    $region41: #{episode_init.1} parent=1 // pred_fallthru
      _
    // Predicated region
    $region42: #{episode_init.1} parent=1 // pred_check
      _
    $region43: #{episode_init.1} parent=1 // pred_check_branch
      %43 = sbr.rel (0) target = $region45
    $region44: #{episode_init.1} parent=1 // pred_region
      _
    $region45: #{episode_init.1} parent=1 // pred_fallthru
      _
    // Predicated region
    $region46: #{episode_init.1} parent=1 // pred_check
      _
    $region47: #{episode_init.1} parent=1 // pred_check_branch
      %45 = sbr.rel (0) target = $region49
    $region48: #{episode_init.1} parent=1 // pred_region
      _
    $region49: #{episode_init.1} parent=1 // pred_fallthru
      _
    %v46 = vld [vmem:[%s0] sm:$0xff]
    %v47 = vld [vmem:[%s0 + $0x8] sm:$0xff]
    %v48 = vld [vmem:[%s0 + $0x10] sm:$0xff]
    %v49 = vld [vmem:[%s0 + $0x18] sm:$0xff]
    %v50 = vld [vmem:[%s0 + $0x20] sm:$0xff]
    %v51 = vld [vmem:[%s0 + $0x28] sm:$0xff]
    %v52 = vld [vmem:[%s0 + $0x30] sm:$0xff]
    %v53 = vld [vmem:[%s0 + $0x38] sm:$0xff]
    %v54 = vld [vmem:[%s1] sm:$0xf]
    %v55 = vld [vmem:[%s2] sm:$0xf]
    %v56 = vld [vmem:[%s3] sm:$0xf]
    %v57 = vld [vmem:[%s4] sm:$0xf]
    %v58 = vld [vmem:[%s5] sm:$0xf]
    %v59 = vadd.f32 %v54, 0.0
    %v60 = vsub.f32 %v55, %v59
    %v61 = vmax.f32 %v60, 0.0
    %v62 = vadd.f32 %v59, %v61
    %v63 = vlaneseq
    %v64 = vshrl.u32 %v63, 7
    %v65 = vsub.s32 0, %v64
    %v66 = vrot.slane %v62, %v65
    %68 = vbcast.lane.b32.xlu0 %v66, 256
    %v69 = vpop.permute.xlu0 %68
    %s71 = sor.u32 256, 8
    %72 = vbcast.lane.b32.xlu0 %v66, %s71
    %v73 = vpop.permute.xlu0 %72
    %v74 = vlaneseq
    %v75 = vshrl.u32 %v74, 7
    %v76 = vsub.s32 1, %v75
    %v77 = vrot.slane %v62, %v76
    %79 = vbcast.lane.b32.xlu0 %v77, 256
    %v80 = vpop.permute.xlu0 %79
    %s82 = sor.u32 256, 8
    %83 = vbcast.lane.b32.xlu0 %v77, %s82
    %v84 = vpop.permute.xlu0 %83
    %v85 = vlaneseq
    %v86 = vshrl.u32 %v85, 7
    %v87 = vsub.s32 2, %v86
    %v88 = vrot.slane %v62, %v87
    %90 = vbcast.lane.b32.xlu0 %v88, 256
    %v91 = vpop.permute.xlu0 %90
    %s93 = sor.u32 256, 8
    %94 = vbcast.lane.b32.xlu0 %v88, %s93
    %v95 = vpop.permute.xlu0 %94
    %v96 = vlaneseq
    %v97 = vshrl.u32 %v96, 7
    %v98 = vsub.s32 3, %v97
    %v99 = vrot.slane %v62, %v98
    %101 = vbcast.lane.b32.xlu0 %v99, 256
    %v102 = vpop.permute.xlu0 %101
    %s104 = sor.u32 256, 8
    %105 = vbcast.lane.b32.xlu0 %v99, %s104
    %v106 = vpop.permute.xlu0 %105
    %v107 = vadd.f32 %v46, %v69
    %v108 = vadd.f32 %v47, %v73
    %v109 = vadd.f32 %v48, %v80
    %v110 = vadd.f32 %v49, %v84
    %v111 = vadd.f32 %v50, %v91
    %v112 = vadd.f32 %v51, %v95
    %v113 = vadd.f32 %v52, %v102
    %v114 = vadd.f32 %v53, %v106
    %v115 = vlaneseq
    %v116 = vshrl.u32 %v115, 7
    %v117 = vsub.s32 0, %v116
    %v118 = vrot.slane %v55, %v117
    %120 = vbcast.lane.b32.xlu0 %v118, 256
    %v121 = vpop.permute.xlu0 %120
    %s123 = sor.u32 256, 8
    %124 = vbcast.lane.b32.xlu0 %v118, %s123
    %v125 = vpop.permute.xlu0 %124
    %v126 = vlaneseq
    %v127 = vshrl.u32 %v126, 7
    %v128 = vsub.s32 1, %v127
    %v129 = vrot.slane %v55, %v128
    %131 = vbcast.lane.b32.xlu0 %v129, 256
    %v132 = vpop.permute.xlu0 %131
    %s134 = sor.u32 256, 8
    %135 = vbcast.lane.b32.xlu0 %v129, %s134
    %v136 = vpop.permute.xlu0 %135
    %v137 = vlaneseq
    %v138 = vshrl.u32 %v137, 7
    %v139 = vsub.s32 2, %v138
    %v140 = vrot.slane %v55, %v139
    %142 = vbcast.lane.b32.xlu0 %v140, 256
    %v143 = vpop.permute.xlu0 %142
    %s145 = sor.u32 256, 8
    %146 = vbcast.lane.b32.xlu0 %v140, %s145
    %v147 = vpop.permute.xlu0 %146
    %v148 = vlaneseq
    %v149 = vshrl.u32 %v148, 7
    %v150 = vsub.s32 3, %v149
    %v151 = vrot.slane %v55, %v150
    %153 = vbcast.lane.b32.xlu0 %v151, 256
    %v154 = vpop.permute.xlu0 %153
    %s156 = sor.u32 256, 8
    %157 = vbcast.lane.b32.xlu0 %v151, %s156
    %v158 = vpop.permute.xlu0 %157
    %v159 = vsub.f32 %v121, %v107
    %v160 = vsub.f32 %v125, %v108
    %v161 = vsub.f32 %v132, %v109
    %v162 = vsub.f32 %v136, %v110
    %v163 = vsub.f32 %v143, %v111
    %v164 = vsub.f32 %v147, %v112
    %v165 = vsub.f32 %v154, %v113
    %v166 = vsub.f32 %v158, %v114
    %v167 = vmax.f32 %v159, 0.0
    %v168 = vmax.f32 %v160, 0.0
    %v169 = vmax.f32 %v161, 0.0
    %v170 = vmax.f32 %v162, 0.0
    %v171 = vmax.f32 %v163, 0.0
    %v172 = vmax.f32 %v164, 0.0
    %v173 = vmax.f32 %v165, 0.0
    %v174 = vmax.f32 %v166, 0.0
    %v175 = vadd.f32 %v107, %v167
    %v176 = vadd.f32 %v108, %v168
    %v177 = vadd.f32 %v109, %v169
    %v178 = vadd.f32 %v110, %v170
    %v179 = vadd.f32 %v111, %v171
    %v180 = vadd.f32 %v112, %v172
    %v181 = vadd.f32 %v113, %v173
    %v182 = vadd.f32 %v114, %v174
    %v185 = vunpack.c.l.s4 1966171168
    %v186 = vunpack.c.0.s8 %v185
    %v187 = vlaneseq
    %v188 = vshrl.u32 %v187, 7
    %v189 = vsub.s32 %v186, %v188
    %v190 = vrot.slane %v56, %v189
    %v191 = vcombine.high %v190, %v190
    %v193 = vunpack.c.l.s4 1966171168
    %v194 = vunpack.c.0.s8 %v193
    %v195 = vlaneseq
    %v196 = vshrl.u32 %v195, 7
    %v197 = vsub.s32 %v194, %v196
    %v198 = vrot.slane %v190, %v197
    %v200 = vunpack.c.l.s4 1966171168
    %v201 = vunpack.c.0.s8 %v200
    %v202 = vlaneseq
    %v203 = vshrl.u32 %v202, 7
    %v204 = vsub.s32 %v201, %v203
    %v205 = vrot.slane %v191, %v204
    %v206 = vcombine.high %v198, %v198
    %v207 = vcombine.high %v205, %v205
    %v208 = vlaneseq
    %v209 = vshrl.u32 %v208, 7
    %v210 = vsub.s32 0, %v209
    %v211 = vrot.slane %v198, %v210
    %v212 = vlaneseq
    %v213 = vshrl.u32 %v212, 7
    %v214 = vsub.s32 0, %v213
    %v215 = vrot.slane %v205, %v214
    %v216 = vlaneseq
    %v217 = vshrl.u32 %v216, 7
    %v218 = vsub.s32 0, %v217
    %v219 = vrot.slane %v206, %v218
    %v220 = vlaneseq
    %v221 = vshrl.u32 %v220, 7
    %v222 = vsub.s32 0, %v221
    %v223 = vrot.slane %v207, %v222
    %vm228 = vcmp.le.f32.partialorder %v175, %v211
    %vm229 = vcmp.le.f32.partialorder %v176, %v211
    %vm230 = vcmp.le.f32.partialorder %v177, %v215
    %vm231 = vcmp.le.f32.partialorder %v178, %v215
    %vm232 = vcmp.le.f32.partialorder %v179, %v219
    %vm233 = vcmp.le.f32.partialorder %v180, %v219
    %vm234 = vcmp.le.f32.partialorder %v181, %v223
    %vm235 = vcmp.le.f32.partialorder %v182, %v223
    %v238 = vunpack.c.l.s4 1966171168
    %v239 = vunpack.c.0.s8 %v238
    %v240 = vlaneseq
    %v241 = vshrl.u32 %v240, 7
    %v242 = vsub.s32 %v239, %v241
    %v243 = vrot.slane %v57, %v242
    %v244 = vcombine.high %v243, %v243
    %v246 = vunpack.c.l.s4 1966171168
    %v247 = vunpack.c.0.s8 %v246
    %v248 = vlaneseq
    %v249 = vshrl.u32 %v248, 7
    %v250 = vsub.s32 %v247, %v249
    %v251 = vrot.slane %v243, %v250
    %v253 = vunpack.c.l.s4 1966171168
    %v254 = vunpack.c.0.s8 %v253
    %v255 = vlaneseq
    %v256 = vshrl.u32 %v255, 7
    %v257 = vsub.s32 %v254, %v256
    %v258 = vrot.slane %v244, %v257
    %v259 = vcombine.high %v251, %v251
    %v260 = vcombine.high %v258, %v258
    %v261 = vlaneseq
    %v262 = vshrl.u32 %v261, 7
    %v263 = vsub.s32 0, %v262
    %v264 = vrot.slane %v251, %v263
    %v265 = vlaneseq
    %v266 = vshrl.u32 %v265, 7
    %v267 = vsub.s32 0, %v266
    %v268 = vrot.slane %v258, %v267
    %v269 = vlaneseq
    %v270 = vshrl.u32 %v269, 7
    %v271 = vsub.s32 0, %v270
    %v272 = vrot.slane %v259, %v271
    %v273 = vlaneseq
    %v274 = vshrl.u32 %v273, 7
    %v275 = vsub.s32 0, %v274
    %v276 = vrot.slane %v260, %v275
    %v281 = vadd.f32 %v175, %v264
    %v282 = vadd.f32 %v176, %v264
    %v283 = vadd.f32 %v177, %v268
    %v284 = vadd.f32 %v178, %v268
    %v285 = vadd.f32 %v179, %v272
    %v286 = vadd.f32 %v180, %v272
    %v287 = vadd.f32 %v181, %v276
    %v288 = vadd.f32 %v182, %v276
    %v291 = vunpack.c.l.s4 1966171168
    %v292 = vunpack.c.0.s8 %v291
    %v293 = vlaneseq
    %v294 = vshrl.u32 %v293, 7
    %v295 = vsub.s32 %v292, %v294
    %v296 = vrot.slane %v58, %v295
    %v297 = vcombine.high %v296, %v296
    %v299 = vunpack.c.l.s4 1966171168
    %v300 = vunpack.c.0.s8 %v299
    %v301 = vlaneseq
    %v302 = vshrl.u32 %v301, 7
    %v303 = vsub.s32 %v300, %v302
    %v304 = vrot.slane %v296, %v303
    %v306 = vunpack.c.l.s4 1966171168
    %v307 = vunpack.c.0.s8 %v306
    %v308 = vlaneseq
    %v309 = vshrl.u32 %v308, 7
    %v310 = vsub.s32 %v307, %v309
    %v311 = vrot.slane %v297, %v310
    %v312 = vcombine.high %v304, %v304
    %v313 = vcombine.high %v311, %v311
    %v314 = vlaneseq
    %v315 = vshrl.u32 %v314, 7
    %v316 = vsub.s32 0, %v315
    %v317 = vrot.slane %v304, %v316
    %v318 = vlaneseq
    %v319 = vshrl.u32 %v318, 7
    %v320 = vsub.s32 0, %v319
    %v321 = vrot.slane %v311, %v320
    %v322 = vlaneseq
    %v323 = vshrl.u32 %v322, 7
    %v324 = vsub.s32 0, %v323
    %v325 = vrot.slane %v312, %v324
    %v326 = vlaneseq
    %v327 = vshrl.u32 %v326, 7
    %v328 = vsub.s32 0, %v327
    %v329 = vrot.slane %v313, %v328
    %330 = vset.pattern.permute.xlu0 0
    %331 = vperm.xlu0 %330, %v317
    %v332 = vpop.permute.xlu0 %331
    %334 = vset.pattern.permute.xlu0 0
    %335 = vperm.xlu0 %334, %v321
    %v336 = vpop.permute.xlu0 %335
    %338 = vset.pattern.permute.xlu0 0
    %339 = vperm.xlu0 %338, %v325
    %v340 = vpop.permute.xlu0 %339
    %342 = vset.pattern.permute.xlu0 0
    %343 = vperm.xlu0 %342, %v329
    %v344 = vpop.permute.xlu0 %343
    %vm346 = vcmp.le.f32.partialorder %v281, %v332
    %vm347 = vcmp.le.f32.partialorder %v282, %v332
    %vm348 = vcmp.le.f32.partialorder %v283, %v336
    %vm349 = vcmp.le.f32.partialorder %v284, %v336
    %vm350 = vcmp.le.f32.partialorder %v285, %v340
    %vm351 = vcmp.le.f32.partialorder %v286, %v340
    %vm352 = vcmp.le.f32.partialorder %v287, %v344
    %vm353 = vcmp.le.f32.partialorder %v288, %v344
    %vm354 = vmand %vm228, %vm346
    %vm355 = vmand %vm229, %vm347
    %vm356 = vmand %vm230, %vm348
    %vm357 = vmand %vm231, %vm349
    %vm358 = vmand %vm232, %vm350
    %vm359 = vmand %vm233, %vm351
    %vm360 = vmand %vm234, %vm352
    %vm361 = vmand %vm235, %vm353
    %v362 = vlaneseq
    %v363 = vshrl.u32 %v362, 7
    %v364 = vadd.s32 %v363, 8
    %v365 = vlaneseq
    %v366 = vand.u32 %v365, 127
    %vm367 = vcmp.eq.s32.totalorder %v363, %v366
    %vm368 = vcmp.eq.s32.totalorder %v364, %v366
    %v369 = vsel %vm354, 1.0, 0.0
    %v370 = vsel %vm355, 1.0, 0.0
    %v371 = vsel %vm356, 1.0, 0.0
    %v372 = vsel %vm357, 1.0, 0.0
    %v373 = vsel %vm358, 1.0, 0.0
    %v374 = vsel %vm359, 1.0, 0.0
    %v375 = vsel %vm360, 1.0, 0.0
    %v376 = vsel %vm361, 1.0, 0.0
    %v377 = vsel %vm367, 1.0, %v369
    %v378 = vsel %vm368, 1.0, %v370
    %v379 = vsel %vm367, 1.0, %v371
    %v380 = vsel %vm368, 1.0, %v372
    %v381 = vsel %vm367, 1.0, %v373
    %v382 = vsel %vm368, 1.0, %v374
    %v383 = vsel %vm367, 1.0, %v375
    %v384 = vsel %vm368, 1.0, %v376
    %vm385 = vcmask 130048
    %386 = vst.msk [vmem:[#allocation2] sm:$0xff] %vm385, %v377
    %387 = vst.msk [vmem:[#allocation2 + $0x8] sm:$0xff] %vm385, %v378
    %388 = vst.msk [vmem:[#allocation2 + $0x10] sm:$0xff] %vm385, %v379
    %389 = vst.msk [vmem:[#allocation2 + $0x18] sm:$0xff] %vm385, %v380
    %390 = vst.msk [vmem:[#allocation2 + $0x20] sm:$0xff] %vm385, %v381
    %391 = vst.msk [vmem:[#allocation2 + $0x28] sm:$0xff] %vm385, %v382
    %392 = vst.msk [vmem:[#allocation2 + $0x30] sm:$0xff] %vm385, %v383
    %393 = vst.msk [vmem:[#allocation2 + $0x38] sm:$0xff] %vm385, %v384
    %v394 = vld [vmem:[%s6] sm:$0xff]
    %v395 = vld [vmem:[%s6 + $0x8] sm:$0xff]
    %v396 = vld [vmem:[%s6 + $0x10] sm:$0xff]
    %v397 = vld [vmem:[%s6 + $0x18] sm:$0xff]
    %v398 = vld [vmem:[%s6 + $0x20] sm:$0xff]
    %v399 = vld [vmem:[%s6 + $0x28] sm:$0xff]
    %v400 = vld [vmem:[%s6 + $0x30] sm:$0xff]
    %v401 = vld [vmem:[%s6 + $0x38] sm:$0xff]
    %v402 = vld [vmem:[%s8] sm:$0xff]
    %v403 = vld [vmem:[%s9] sm:$0x1]
    %v405 = vlaneseq
    %v406 = vshrl.u32 %v405, 7
    %v407 = vsub.s32 0, %v406
    %v408 = vrot.slane %v403, %v407
    %vm410 = vcmask 64512
    %v412 = vsel %vm410, %v394, 0
    %v415 = vsel %vm410, %v395, 0
    %v418 = vsel %vm410, %v396, 0
    %v421 = vsel %vm410, %v397, 0
    %v424 = vsel %vm410, %v398, 0
    %v427 = vsel %vm410, %v399, 0
    %v430 = vsel %vm410, %v400, 0
    %v433 = vsel %vm410, %v401, 0
    %435 = vmatprep.subr.mxu0 0.0
    %436 = vmatpush1.msra.mxu0 %v402
    %437 = vmatprep.subr.mxu0 0.0
    %438 = vmatpush1.msra.mxu0 0.0
    %439 = vmatprep.subr.mxu0 0.0
    %440 = vmatpush1.msra.mxu0 0.0
    %441 = vmatprep.subr.mxu0 0.0
    %442 = vmatpush1.msra.mxu0 0.0
    %443 = vmatprep.subr.mxu0 0.0
    %444 = vmatpush1.msra.mxu0 0.0
    %445 = vmatprep.subr.mxu0 0.0
    %446 = vmatpush1.msra.mxu0 0.0
    %447 = vmatprep.subr.mxu0 0.0
    %448 = vmatpush1.msra.mxu0 0.0
    %449 = vmatprep.subr.mxu0 0.0
    %450 = vmatpush1.msra.mxu0 0.0
    %451 = vmatprep.subr.mxu0 0.0
    %452 = vmatpush1.msra.mxu0 0.0
    %453 = vmatprep.subr.mxu0 0.0
    %454 = vmatpush1.msra.mxu0 0.0
    %455 = vmatprep.subr.mxu0 0.0
    %456 = vmatpush1.msra.mxu0 0.0
    %457 = vmatprep.subr.mxu0 0.0
    %458 = vmatpush1.msra.mxu0 0.0
    %459 = vmatprep.subr.mxu0 0.0
    %460 = vmatpush1.msra.mxu0 0.0
    %461 = vmatprep.subr.mxu0 0.0
    %462 = vmatpush1.msra.mxu0 0.0
    %463 = vmatprep.subr.mxu0 0.0
    %464 = vmatpush1.msra.mxu0 0.0
    %465 = vmatprep.subr.mxu0 0.0
    %466 = vmatpush1.msra.mxu0 0.0
    %467 = vmatprep.subr.mxu0 0.0
    %468 = vmatpush1.msra.mxu0 0.0
    %469 = vmatprep.subr.mxu0 0.0
    %470 = vmatpush1.msra.mxu0 0.0
    %471 = vmatprep.subr.mxu0 0.0
    %472 = vmatpush1.msra.mxu0 0.0
    %473 = vmatprep.subr.mxu0 0.0
    %474 = vmatpush1.msra.mxu0 0.0
    %475 = vmatprep.subr.mxu0 0.0
    %476 = vmatpush1.msra.mxu0 0.0
    %477 = vmatprep.subr.mxu0 0.0
    %478 = vmatpush1.msra.mxu0 0.0
    %479 = vmatprep.subr.mxu0 0.0
    %480 = vmatpush1.msra.mxu0 0.0
    %481 = vmatprep.subr.mxu0 0.0
    %482 = vmatpush1.msra.mxu0 0.0
    %483 = vmatprep.subr.mxu0 0.0
    %484 = vmatpush1.msra.mxu0 0.0
    %485 = vmatprep.subr.mxu0 0.0
    %486 = vmatpush1.msra.mxu0 0.0
    %487 = vmatprep.subr.mxu0 0.0
    %488 = vmatpush1.msra.mxu0 0.0
    %489 = vmatprep.subr.mxu0 0.0
    %490 = vmatpush1.msra.mxu0 0.0
    %491 = vmatprep.subr.mxu0 0.0
    %492 = vmatpush1.msra.mxu0 0.0
    %493 = vmatprep.subr.mxu0 0.0
    %494 = vmatpush1.msra.mxu0 0.0
    %495 = vmatprep.subr.mxu0 0.0
    %496 = vmatpush1.msra.mxu0 0.0
    %497 = vmatprep.subr.mxu0 0.0
    %498 = vmatpush1.msra.mxu0 0.0
    %499 = vmatprep.mubr.f32.mxu0 0.0
    %500 = vmatmul.mubr.f32.gmra.mrb[0].mxu0 %v412
    %v501 = vpop.f32.mrb[0].mxu0
    %v502 = vadd.f32 %v408, %v501
    %v503 = vpop.f32.mrb[0].mxu0
    %504 = vmatprep.mubr.f32.mxu0 0.0
    %505 = vmatmul.mubr.f32.gmra.mrb[0].mxu0 %v415
    %v506 = vpop.f32.mrb[0].mxu0
    %v507 = vadd.f32 %v408, %v506
    %v508 = vpop.f32.mrb[0].mxu0
    %509 = vmatprep.mubr.f32.mxu0 0.0
    %510 = vmatmul.mubr.f32.gmra.mrb[0].mxu0 %v418
    %v511 = vpop.f32.mrb[0].mxu0
    %v512 = vadd.f32 %v408, %v511
    %v513 = vpop.f32.mrb[0].mxu0
    %514 = vmatprep.mubr.f32.mxu0 0.0
    %515 = vmatmul.mubr.f32.gmra.mrb[0].mxu0 %v421
    %v516 = vpop.f32.mrb[0].mxu0
    %v517 = vadd.f32 %v408, %v516
    %v518 = vpop.f32.mrb[0].mxu0
    %519 = vmatprep.mubr.f32.mxu0 0.0
    %520 = vmatmul.mubr.f32.gmra.mrb[0].mxu0 %v424
    %v521 = vpop.f32.mrb[0].mxu0
    %v522 = vadd.f32 %v408, %v521
    %v523 = vpop.f32.mrb[0].mxu0
    %524 = vmatprep.mubr.f32.mxu0 0.0
    %525 = vmatmul.mubr.f32.gmra.mrb[0].mxu0 %v427
    %v526 = vpop.f32.mrb[0].mxu0
    %v527 = vadd.f32 %v408, %v526
    %v528 = vpop.f32.mrb[0].mxu0
    %529 = vmatprep.mubr.f32.mxu0 0.0
    %530 = vmatmul.mubr.f32.gmra.mrb[0].mxu0 %v430
    %v531 = vpop.f32.mrb[0].mxu0
    %v532 = vadd.f32 %v408, %v531
    %v533 = vpop.f32.mrb[0].mxu0
    %534 = vmatprep.mubr.f32.mxu0 0.0
    %535 = vmatmul.mubr.f32.gmra.mrb[0].mxu0 %v433
    %v536 = vpop.f32.mrb[0].mxu0
    %v537 = vadd.f32 %v408, %v536
    %v538 = vpop.f32.mrb[0].mxu0
    %539 = vdwg.mxu0
    %v540 = vld [vmem:[%s7] sm:$0xff]
    %v541 = vld [vmem:[%s7 + $0x8] sm:$0xff]
    %v542 = vld [vmem:[%s7 + $0x10] sm:$0xff]
    %v543 = vld [vmem:[%s7 + $0x18] sm:$0xff]
    %v544 = vld [vmem:[%s7 + $0x20] sm:$0xff]
    %v545 = vld [vmem:[%s7 + $0x28] sm:$0xff]
    %v546 = vld [vmem:[%s7 + $0x30] sm:$0xff]
    %v547 = vld [vmem:[%s7 + $0x38] sm:$0xff]
    %v548 = vld [vmem:[%s10] sm:$0xff]
    %v549 = vld [vmem:[%s11] sm:$0x1]
    %v551 = vlaneseq
    %v552 = vshrl.u32 %v551, 7
    %v553 = vsub.s32 0, %v552
    %v554 = vrot.slane %v549, %v553
    %v557 = vsel %vm410, %v540, 0
    %v560 = vsel %vm410, %v541, 0
    %v563 = vsel %vm410, %v542, 0
    %v566 = vsel %vm410, %v543, 0
    %v569 = vsel %vm410, %v544, 0
    %v572 = vsel %vm410, %v545, 0
    %v575 = vsel %vm410, %v546, 0
    %v578 = vsel %vm410, %v547, 0
    %580 = vmatprep.subr.mxu0 0.0
    %581 = vmatpush1.msra.mxu0 %v548
    %582 = vmatprep.subr.mxu0 0.0
    %583 = vmatpush1.msra.mxu0 0.0
    %584 = vmatprep.subr.mxu0 0.0
    %585 = vmatpush1.msra.mxu0 0.0
    %586 = vmatprep.subr.mxu0 0.0
    %587 = vmatpush1.msra.mxu0 0.0
    %588 = vmatprep.subr.mxu0 0.0
    %589 = vmatpush1.msra.mxu0 0.0
    %590 = vmatprep.subr.mxu0 0.0
    %591 = vmatpush1.msra.mxu0 0.0
    %592 = vmatprep.subr.mxu0 0.0
    %593 = vmatpush1.msra.mxu0 0.0
    %594 = vmatprep.subr.mxu0 0.0
    %595 = vmatpush1.msra.mxu0 0.0
    %596 = vmatprep.subr.mxu0 0.0
    %597 = vmatpush1.msra.mxu0 0.0
    %598 = vmatprep.subr.mxu0 0.0
    %599 = vmatpush1.msra.mxu0 0.0
    %600 = vmatprep.subr.mxu0 0.0
    %601 = vmatpush1.msra.mxu0 0.0
    %602 = vmatprep.subr.mxu0 0.0
    %603 = vmatpush1.msra.mxu0 0.0
    %604 = vmatprep.subr.mxu0 0.0
    %605 = vmatpush1.msra.mxu0 0.0
    %606 = vmatprep.subr.mxu0 0.0
    %607 = vmatpush1.msra.mxu0 0.0
    %608 = vmatprep.subr.mxu0 0.0
    %609 = vmatpush1.msra.mxu0 0.0
    %610 = vmatprep.subr.mxu0 0.0
    %611 = vmatpush1.msra.mxu0 0.0
    %612 = vmatprep.subr.mxu0 0.0
    %613 = vmatpush1.msra.mxu0 0.0
    %614 = vmatprep.subr.mxu0 0.0
    %615 = vmatpush1.msra.mxu0 0.0
    %616 = vmatprep.subr.mxu0 0.0
    %617 = vmatpush1.msra.mxu0 0.0
    %618 = vmatprep.subr.mxu0 0.0
    %619 = vmatpush1.msra.mxu0 0.0
    %620 = vmatprep.subr.mxu0 0.0
    %621 = vmatpush1.msra.mxu0 0.0
    %622 = vmatprep.subr.mxu0 0.0
    %623 = vmatpush1.msra.mxu0 0.0
    %624 = vmatprep.subr.mxu0 0.0
    %625 = vmatpush1.msra.mxu0 0.0
    %626 = vmatprep.subr.mxu0 0.0
    %627 = vmatpush1.msra.mxu0 0.0
    %628 = vmatprep.subr.mxu0 0.0
    %629 = vmatpush1.msra.mxu0 0.0
    %630 = vmatprep.subr.mxu0 0.0
    %631 = vmatpush1.msra.mxu0 0.0
    %632 = vmatprep.subr.mxu0 0.0
    %633 = vmatpush1.msra.mxu0 0.0
    %634 = vmatprep.subr.mxu0 0.0
    %635 = vmatpush1.msra.mxu0 0.0
    %636 = vmatprep.subr.mxu0 0.0
    %637 = vmatpush1.msra.mxu0 0.0
    %638 = vmatprep.subr.mxu0 0.0
    %639 = vmatpush1.msra.mxu0 0.0
    %640 = vmatprep.subr.mxu0 0.0
    %641 = vmatpush1.msra.mxu0 0.0
    %642 = vmatprep.subr.mxu0 0.0
    %643 = vmatpush1.msra.mxu0 0.0
    %644 = vmatprep.mubr.f32.mxu0 0.0
    %645 = vmatmul.mubr.f32.gmra.mrb[0].mxu0 %v557
    %v646 = vpop.f32.mrb[0].mxu0
    %v647 = vadd.f32 %v554, %v646
    %v648 = vpop.f32.mrb[0].mxu0
    %649 = vmatprep.mubr.f32.mxu0 0.0
    %650 = vmatmul.mubr.f32.gmra.mrb[0].mxu0 %v560
    %v651 = vpop.f32.mrb[0].mxu0
    %v652 = vadd.f32 %v554, %v651
    %v653 = vpop.f32.mrb[0].mxu0
    %654 = vmatprep.mubr.f32.mxu0 0.0
    %655 = vmatmul.mubr.f32.gmra.mrb[0].mxu0 %v563
    %v656 = vpop.f32.mrb[0].mxu0
    %v657 = vadd.f32 %v554, %v656
    %v658 = vpop.f32.mrb[0].mxu0
    %659 = vmatprep.mubr.f32.mxu0 0.0
    %660 = vmatmul.mubr.f32.gmra.mrb[0].mxu0 %v566
    %v661 = vpop.f32.mrb[0].mxu0
    %v662 = vadd.f32 %v554, %v661
    %v663 = vpop.f32.mrb[0].mxu0
    %664 = vmatprep.mubr.f32.mxu0 0.0
    %665 = vmatmul.mubr.f32.gmra.mrb[0].mxu0 %v569
    %v666 = vpop.f32.mrb[0].mxu0
    %v667 = vadd.f32 %v554, %v666
    %v668 = vpop.f32.mrb[0].mxu0
    %669 = vmatprep.mubr.f32.mxu0 0.0
    %670 = vmatmul.mubr.f32.gmra.mrb[0].mxu0 %v572
    %v671 = vpop.f32.mrb[0].mxu0
    %v672 = vadd.f32 %v554, %v671
    %v673 = vpop.f32.mrb[0].mxu0
    %674 = vmatprep.mubr.f32.mxu0 0.0
    %675 = vmatmul.mubr.f32.gmra.mrb[0].mxu0 %v575
    %v676 = vpop.f32.mrb[0].mxu0
    %v677 = vadd.f32 %v554, %v676
    %v678 = vpop.f32.mrb[0].mxu0
    %679 = vmatprep.mubr.f32.mxu0 0.0
    %680 = vmatmul.mubr.f32.gmra.mrb[0].mxu0 %v578
    %v681 = vpop.f32.mrb[0].mxu0
    %v682 = vadd.f32 %v554, %v681
    %v683 = vpop.f32.mrb[0].mxu0
    %684 = vdwg.mxu0
    %vm685 = vcmask 261120
    %686 = vst.msk [vmem:[#allocation4] sm:$0xff] %vm685, %v502
    %687 = vst.msk [vmem:[#allocation4 + $0x8] sm:$0xff] %vm685, %v507
    %688 = vst.msk [vmem:[#allocation4 + $0x10] sm:$0xff] %vm685, %v512
    %689 = vst.msk [vmem:[#allocation4 + $0x18] sm:$0xff] %vm685, %v517
    %690 = vst.msk [vmem:[#allocation4 + $0x20] sm:$0xff] %vm685, %v522
    %691 = vst.msk [vmem:[#allocation4 + $0x28] sm:$0xff] %vm685, %v527
    %692 = vst.msk [vmem:[#allocation4 + $0x30] sm:$0xff] %vm685, %v532
    %693 = vst.msk [vmem:[#allocation4 + $0x38] sm:$0xff] %vm685, %v537
    %702 = vrot.lane.b32.xlu0 %v647, 32
    %v703 = vpop.permute.xlu0 %702
    %704 = vrot.lane.b32.xlu0 %v652, 32
    %v705 = vpop.permute.xlu0 %704
    %706 = vrot.lane.b32.xlu0 %v657, 32
    %v707 = vpop.permute.xlu0 %706
    %708 = vrot.lane.b32.xlu0 %v662, 32
    %v709 = vpop.permute.xlu0 %708
    %710 = vrot.lane.b32.xlu0 %v667, 32
    %v711 = vpop.permute.xlu0 %710
    %712 = vrot.lane.b32.xlu0 %v672, 32
    %v713 = vpop.permute.xlu0 %712
    %714 = vrot.lane.b32.xlu0 %v677, 32
    %v715 = vpop.permute.xlu0 %714
    %716 = vrot.lane.b32.xlu0 %v682, 32
    %v717 = vpop.permute.xlu0 %716
    %v726 = vsel %vm685, %v502, %v703
    %v727 = vsel %vm685, %v507, %v705
    %v728 = vsel %vm685, %v512, %v707
    %v729 = vsel %vm685, %v517, %v709
    %v730 = vsel %vm685, %v522, %v711
    %v731 = vsel %vm685, %v527, %v713
    %v732 = vsel %vm685, %v532, %v715
    %v733 = vsel %vm685, %v537, %v717
    %vm734 = vcmask 523264
    %735 = vst.msk [vmem:[#allocation6] sm:$0xff] %vm734, %v726
    %736 = vst.msk [vmem:[#allocation6 + $0x8] sm:$0xff] %vm734, %v727
    %737 = vst.msk [vmem:[#allocation6 + $0x10] sm:$0xff] %vm734, %v728
    %738 = vst.msk [vmem:[#allocation6 + $0x18] sm:$0xff] %vm734, %v729
    %739 = vst.msk [vmem:[#allocation6 + $0x20] sm:$0xff] %vm734, %v730
    %740 = vst.msk [vmem:[#allocation6 + $0x28] sm:$0xff] %vm734, %v731
    %741 = vst.msk [vmem:[#allocation6 + $0x30] sm:$0xff] %vm734, %v732
    %742 = vst.msk [vmem:[#allocation6 + $0x38] sm:$0xff] %vm734, %v733
    // Predicated region
    $region50: #{episode_init.1} parent=1 // pred_check
      _
    $region51: #{episode_init.1} parent=1 // pred_check_branch
      %744 = sbr.rel (0) target = $region53
    $region52: #{episode_init.1} parent=1 // pred_region
      %s746 = ssub.s32 1024, 1024
      %747 = vsyncadd [#allocation3], %s746
      %s748 = sshll.u32 [#allocation2], 4
      %s749 = int_to_ptr.vmem [resolvable:$true] %s748
      %754 = dma.vmem_to_hbm [thread:$0]  %s749, 1024, %s12, [#allocation3], 128, 128, 8
    $region53: #{episode_init.1} parent=1 // pred_fallthru
      _
    // Predicated region
    $region54: #{episode_init.1} parent=1 // pred_check
      _
    $region55: #{episode_init.1} parent=1 // pred_check_branch
      %756 = sbr.rel (0) target = $region57
    $region56: #{episode_init.1} parent=1 // pred_region
      %s758 = ssub.s32 1024, 1024
      %759 = vsyncadd [#allocation5], %s758
      %s760 = sshll.u32 [#allocation4], 4
      %s761 = int_to_ptr.vmem [resolvable:$true] %s760
      %766 = dma.vmem_to_hbm [thread:$0]  %s761, 1024, %s13, [#allocation5], 128, 128, 8
    $region57: #{episode_init.1} parent=1 // pred_fallthru
      _
    // Predicated region
    $region58: #{episode_init.1} parent=1 // pred_check
      _
    $region59: #{episode_init.1} parent=1 // pred_check_branch
      %768 = sbr.rel (0) target = $region61
    $region60: #{episode_init.1} parent=1 // pred_region
      %s770 = ssub.s32 1024, 1024
      %771 = vsyncadd [#allocation5], %s770
      %s772 = sshll.u32 [#allocation6], 4
      %s773 = int_to_ptr.vmem [resolvable:$true] %s772
      %778 = dma.vmem_to_hbm [thread:$0]  %s773, 1024, %s14, [#allocation5], 128, 128, 8
    $region61: #{episode_init.1} parent=1 // pred_fallthru
      _
    // Predicated region
    $region62: #{episode_init.1} parent=1 // pred_check
      _
    $region63: #{episode_init.1} parent=1 // pred_check_branch
      %780 = sbr.rel (0) target = $region65
    $region64: #{episode_init.1} parent=1 // pred_region
      %781 = dma.done [#allocation3], 1024
    $region65: #{episode_init.1} parent=1 // pred_fallthru
      _
    // Predicated region
    $region66: #{episode_init.1} parent=1 // pred_check
      _
    $region67: #{episode_init.1} parent=1 // pred_check_branch
      %783 = sbr.rel (0) target = $region69
    $region68: #{episode_init.1} parent=1 // pred_region
      %784 = dma.done [#allocation5], 1024
    $region69: #{episode_init.1} parent=1 // pred_fallthru
      _
    // Predicated region
    $region70: #{episode_init.1} parent=1 // pred_check
      _
    $region71: #{episode_init.1} parent=1 // pred_check_branch
      %786 = sbr.rel (0) target = $region73
    $region72: #{episode_init.1} parent=1 // pred_region
      %787 = dma.done [#allocation5], 1024
    $region73: #{episode_init.1} parent=1 // pred_fallthru
      _
    %788 = vsyncpa [#allocation3], 1
    %789 = vsyncpa [#allocation5], 1

</llo_original>
